<compile_context>
chip_gen: v7x
topology: tpu7x:2x2x1
jax: 0.10.0
libtpu: 0.0.40
codegen_flags: <defaults>
</compile_context>

<pallas_src>
import jax
import jax.numpy as jnp
from jax.experimental import pallas as pl
from jax.experimental.pallas import tpu as pltpu

_LN_EPS = 1e-5                  # PyTorch nn.LayerNorm default
_ELU_ALPHA = 1.0                # PyTorch nn.ELU default
_MAX_TILE_B = 4096              # batch rows per grid step (few MiB of VMEM)
_TILE_QUANTUM = 16              # bf16 sublane packing for the input block
_MATMUL_DTYPE = jnp.bfloat16    # MXU operand dtype (accumulation stays f32)


def _round_up(x, m):
    return ((x + m - 1) // m) * m


# --------------------------------------------------------------------------
# Fused kernel: (Linear -> ELU -> LayerNorm) * n_hidden -> Linear
# --------------------------------------------------------------------------
def _make_fused_mlp_kernel(n_hidden):
    """Ref order: x_ref, [w, b, gamma, beta] * n_hidden, w_fin, b_fin, o_ref.

    The entire MLP runs on one batch tile; the carried activation lives in
    vregs/VMEM between layers (no intermediate HBM traffic).  Rows are fully
    independent, so garbage rows in a ragged last batch block are harmless
    (they are masked out on the output store).
    """

    def kernel(*refs):
        x_ref = refs[0]
        o_ref = refs[-1]
        p = refs[1:-1]

        x = x_ref[...]                                 # matmul dtype [tb, Din]
        for layer in range(n_hidden):
            w_ref, b_ref, g_ref, beta_ref = p[4 * layer: 4 * layer + 4]

            # Linear on the MXU: operands in the weight dtype (bf16 default),
            # f32 accumulation, f32 bias.  Layer 0's lhs is already bf16
            # (wrapper-cast), so the astype is a no-op there.
            y = jnp.dot(
                x.astype(w_ref.dtype), w_ref[...],
                preferred_element_type=jnp.float32) + b_ref[...]

            # ELU (alpha=1): y if y > 0 else alpha*(exp(y)-1).
            # exp() runs on the EUP slot; select on the VPU.
            neg = _ELU_ALPHA * (jnp.exp(jnp.minimum(y, 0.0)) - 1.0)
            a = jnp.where(y > 0.0, y, neg)

            # LayerNorm over the feature (lane) axis — single-pass stats:
            # mu = E[a], var = E[a^2] - mu^2 (biased, eps=1e-5, affine), which
            # matches torch defaults while halving XLU cross-lane reductions.
            mu = jnp.mean(a, axis=-1, keepdims=True)
            ex2 = jnp.mean(a * a, axis=-1, keepdims=True)
            var = jnp.maximum(ex2 - mu * mu, 0.0)
            x = (a - mu) * jax.lax.rsqrt(var + _LN_EPS) * g_ref[...] \
                + beta_ref[...]

        # Final Linear (no activation / LN).
        w_ref, b_ref = p[4 * n_hidden], p[4 * n_hidden + 1]
        out = jnp.dot(
            x.astype(w_ref.dtype), w_ref[...],
            preferred_element_type=jnp.float32) + b_ref[...]
        # Single store per tile; last dim equals the full array dim.
        o_ref[...] = out.astype(o_ref.dtype)

    return kernel


def _param_spec(shape):
    # Parameters: full array, same block every grid step -> VMEM resident.
    return pl.BlockSpec(shape, lambda i, _n=len(shape): (0,) * _n)


# --------------------------------------------------------------------------
# Forward wrapper (single fused pallas_call, batch-tiled grid), jitted.
# --------------------------------------------------------------------------
def _forward_impl(params, observations, out_dtype=jnp.float32):
    hidden = params["hidden"]
    w_fin, b_fin = params["final"]
    n_hidden = len(hidden)

    # Matmul operand dtype comes from the stored weights (bf16 by default,
    # f32 if the fidelity mode was requested at init).
    mm_dtype = hidden[0][0].dtype if n_hidden else w_fin.dtype

    # Feed the kernel observations already in the matmul dtype: this halves
    # the dominant HBM input stream for bf16 (callers that can produce bf16
    # observations upstream avoid the cast entirely; otherwise it fuses with
    # the producing op under jit).
    x = observations.astype(mm_dtype)
    B, obs_dim = x.shape
    action_dim = w_fin.shape[1]

    # Batch tiling:
    #   * large tiles amortize the ~0.35 us per-grid-step overhead;
    #   * cdiv(B, 2) guarantees >= 2 grid steps whenever B > 16 so that the
    #     "parallel" batch axis can shard across v7x's two TensorCores;
    #   * rounding to 16 satisfies bf16 sublane packing for the input block
    #     (and f32's 8-row requirement in fidelity mode).
    tile_b = min(_MAX_TILE_B, _round_up(pl.cdiv(B, 2), _TILE_QUANTUM))
    grid = (pl.cdiv(B, tile_b),)   # ragged last block: masked on store

    # Flat operand list.  Weights are already stored in the matmul dtype, so
    # no per-call casts of parameters; biases / LN affine stay f32.
    operands = [x]
    in_specs = [pl.BlockSpec((tile_b, obs_dim), lambda i: (i, 0))]
    for (w, b, g, beta) in hidden:
        for arr in (w, b, g, beta):
            operands.append(arr)
            in_specs.append(_param_spec(arr.shape))
    for arr in (w_fin, b_fin):
        operands.append(arr)
        in_specs.append(_param_spec(arr.shape))

    out = pl.pallas_call(
        _make_fused_mlp_kernel(n_hidden),
        out_shape=jax.ShapeDtypeStruct((B, action_dim), out_dtype),
        grid=grid,
        in_specs=in_specs,
        out_specs=pl.BlockSpec((tile_b, action_dim), lambda i: (i, 0)),
        compiler_params=pltpu.CompilerParams(
            # Batch axis is independent across tiles -> shard over the two
            # TensorCores on v7x; harmless on single-TC v5e/v6e.
            dimension_semantics=("parallel",),
            # Explicit limit so v5e's 16 MiB scoped-VMEM default never bites
            # at the larger tiles; 32 MiB is the default on v6e/v7x anyway.
            vmem_limit_bytes=32 * 1024 * 1024,
        ),
    )(*operands)

    return out


actor_forward = jax.jit(_forward_impl, static_argnames=("out_dtype",))


# --------------------------------------------------------------------------
# Parameter init mirroring the PyTorch module's __init__:
# orthogonal(gain=sqrt(2)) Linear weights, zero biases, LN gamma=1 / beta=0.
# Weights are stored pre-cast to the matmul dtype (bf16 default) so the
# jitted forward never re-casts parameters.
# --------------------------------------------------------------------------
def init_actor_params(key, obs_dim, units, action_dim, init_gain=2.0 ** 0.5,
                      matmul_dtype=_MATMUL_DTYPE):
    layer_dims = [obs_dim] + list(units) + [action_dim]
    n_layers = len(layer_dims) - 1
    ortho = jax.nn.initializers.orthogonal(scale=init_gain)
    keys = jax.random.split(key, n_layers)

    hidden = []
    final = None
    for i in range(n_layers):
        din, dout = layer_dims[i], layer_dims[i + 1]
        # PyTorch Linear.weight is (out, in); orthogonal_ applied there, then
        # stored transposed (in, out) so the kernel computes x @ W.
        w_torch = ortho(keys[i], (dout, din), jnp.float32)
        w = jnp.transpose(w_torch).astype(matmul_dtype)   # [Din, Dout]
        b = jnp.zeros((1, dout), jnp.float32)              # [1, Dout]
        if i < n_layers - 1:
            gamma = jnp.ones((1, dout), jnp.float32)
            beta = jnp.zeros((1, dout), jnp.float32)
            hidden.append((w, b, gamma, beta))
        else:
            final = (w, b)
    return {"hidden": tuple(hidden), "final": final}


# --------------------------------------------------------------------------
# Pure-JAX references for correctness checking.
# --------------------------------------------------------------------------
def _reference_forward_f32(params, observations):
    """PyTorch-module f32 semantics (weights upcast from their stored dtype)."""
    x = observations.astype(jnp.float32)
    for (w, b, g, beta) in params["hidden"]:
        y = x @ w.astype(jnp.float32) + b
        a = jnp.where(y > 0.0, y,
                      _ELU_ALPHA * (jnp.exp(jnp.minimum(y, 0.0)) - 1.0))
        mu = jnp.mean(a, axis=-1, keepdims=True)
        var = jnp.mean((a - mu) ** 2, axis=-1, keepdims=True)
        x = (a - mu) * jax.lax.rsqrt(var + _LN_EPS) * g + beta
    w, b = params["final"]
    return x @ w.astype(jnp.float32) + b


def _reference_forward_matched(params, observations):
    """Same numerics as the kernel: matmul-dtype operands, f32 accumulation."""
    hidden = params["hidden"]
    w_fin, _ = params["final"]
    mm_dtype = hidden[0][0].dtype if hidden else w_fin.dtype
    x = observations.astype(mm_dtype)
    for (w, b, g, beta) in hidden:
        y = jnp.dot(x.astype(mm_dtype), w,
                    preferred_element_type=jnp.float32) + b
        a = jnp.where(y > 0.0, y,
                      _ELU_ALPHA * (jnp.exp(jnp.minimum(y, 0.0)) - 1.0))
        mu = jnp.mean(a, axis=-1, keepdims=True)
        ex2 = jnp.mean(a * a, axis=-1, keepdims=True)
        var = jnp.maximum(ex2 - mu * mu, 0.0)
        x = (a - mu) * jax.lax.rsqrt(var + _LN_EPS) * g + beta
    w, b = params["final"]
    return jnp.dot(x.astype(mm_dtype), w,
                   preferred_element_type=jnp.float32) + b


if __name__ == "__main__":
    # Small shapes consistent with the module's forward.
    batch = 8
    obs_dim = 32
    units = [64, 32]
    action_dim = 8

    key = jax.random.PRNGKey(0)
    pkey, xkey = jax.random.split(key)

    params = init_actor_params(pkey, obs_dim, units, action_dim)
    observations = jax.random.normal(xkey, (batch, obs_dim), jnp.float32)

    out = actor_forward(params, observations)
    out = jax.block_until_ready(out)
    assert out.shape == (batch, action_dim), out.shape
    assert out.dtype == jnp.float32, out.dtype

    # Tight check against a reference with identical matmul-operand numerics
    # (kernel vs reference differ only in accumulation order / transcendental
    # implementation).
    ref_m = _reference_forward_matched(params, observations)
    assert jnp.allclose(out, ref_m, atol=1e-3, rtol=1e-3), (
        "mismatch vs matched reference: max |diff| = %g"
        % float(jnp.max(jnp.abs(out - ref_m))))

    # Looser check against f32 PyTorch-module semantics; the only deviation is
    # bf16 rounding of the MXU operands.
    ref_f32 = _reference_forward_f32(params, observations)
    assert jnp.allclose(out, ref_f32, atol=5e-2, rtol=5e-2), (
        "mismatch vs f32 reference: max |diff| = %g"
        % float(jnp.max(jnp.abs(out - ref_f32))))

    # Also exercise a ragged, multi-step grid (B not a multiple of tile_b) to
    # confirm the no-pad / masked-edge path is correct.
    xkey2 = jax.random.fold_in(xkey, 1)
    obs_big = jax.random.normal(xkey2, (100, obs_dim), jnp.float32)
    out_big = jax.block_until_ready(actor_forward(params, obs_big))
    ref_big = _reference_forward_matched(params, obs_big)
    assert out_big.shape == (100, action_dim)
    assert jnp.allclose(out_big, ref_big, atol=1e-3, rtol=1e-3), (
        "ragged-grid mismatch: max |diff| = %g"
        % float(jnp.max(jnp.abs(out_big - ref_big))))

    print("KERNEL_OK")
</pallas_src>

<mosaic_0001>
module attributes {stable_mosaic.version = 11 : i64} {
  func.func @kernel(%arg0: i32, %arg1: memref<16x32xbf16, #tpu.memory_space<vmem>>, %arg2: memref<32x64xbf16, #tpu.memory_space<vmem>>, %arg3: memref<1x64xf32, #tpu.memory_space<vmem>>, %arg4: memref<1x64xf32, #tpu.memory_space<vmem>>, %arg5: memref<1x64xf32, #tpu.memory_space<vmem>>, %arg6: memref<64x32xbf16, #tpu.memory_space<vmem>>, %arg7: memref<1x32xf32, #tpu.memory_space<vmem>>, %arg8: memref<1x32xf32, #tpu.memory_space<vmem>>, %arg9: memref<1x32xf32, #tpu.memory_space<vmem>>, %arg10: memref<32x8xbf16, #tpu.memory_space<vmem>>, %arg11: memref<1x8xf32, #tpu.memory_space<vmem>>, %arg12: memref<16x8xf32, #tpu.memory_space<vmem>>) attributes {dimension_semantics = [#tpu.dimension_semantics<parallel>], iteration_bounds = array<i64: 1>, scalar_prefetch = 0 : i64, scratch_operands = 0 : i64, tpu.core_type = #tpu.core_type<tc>, window_params = [{transform_indices = @transform_0, window_bounds = array<i64: 16, 32>}, {pipeline_mode = #tpu.pipeline_mode<synchronous>, transform_indices = @transform_1, window_bounds = array<i64: 32, 64>}, {pipeline_mode = #tpu.pipeline_mode<synchronous>, transform_indices = @transform_2, window_bounds = array<i64: 1, 64>}, {pipeline_mode = #tpu.pipeline_mode<synchronous>, transform_indices = @transform_3, window_bounds = array<i64: 1, 64>}, {pipeline_mode = #tpu.pipeline_mode<synchronous>, transform_indices = @transform_4, window_bounds = array<i64: 1, 64>}, {pipeline_mode = #tpu.pipeline_mode<synchronous>, transform_indices = @transform_5, window_bounds = array<i64: 64, 32>}, {pipeline_mode = #tpu.pipeline_mode<synchronous>, transform_indices = @transform_6, window_bounds = array<i64: 1, 32>}, {pipeline_mode = #tpu.pipeline_mode<synchronous>, transform_indices = @transform_7, window_bounds = array<i64: 1, 32>}, {pipeline_mode = #tpu.pipeline_mode<synchronous>, transform_indices = @transform_8, window_bounds = array<i64: 1, 32>}, {pipeline_mode = #tpu.pipeline_mode<synchronous>, transform_indices = @transform_9, window_bounds = array<i64: 32, 8>}, {pipeline_mode = #tpu.pipeline_mode<synchronous>, transform_indices = @transform_10, window_bounds = array<i64: 1, 8>}, {transform_indices = @transform_11, window_bounds = array<i64: 16, 8>}]} {
    %c0 = arith.constant 0 : index
    %c0_0 = arith.constant 0 : index
    %0 = vector.load %arg1[%c0, %c0_0] : memref<16x32xbf16, #tpu.memory_space<vmem>>, vector<16x32xbf16>
    %c0_1 = arith.constant 0 : index
    %c0_2 = arith.constant 0 : index
    %1 = vector.load %arg2[%c0_1, %c0_2] : memref<32x64xbf16, #tpu.memory_space<vmem>>, vector<32x64xbf16>
    %cst = arith.constant dense<0.000000e+00> : vector<16x64xf32>
    %2 = tpu.matmul %0, %1, %cst {dimension_numbers = #tpu.dot_dimension_numbers<[1], [0], [0], [1], [0, 0, 1, 1], [], []>} : vector<16x32xbf16>, vector<32x64xbf16>, vector<16x64xf32> -> vector<16x64xf32>
    %c0_3 = arith.constant 0 : index
    %c0_4 = arith.constant 0 : index
    %3 = vector.load %arg3[%c0_3, %c0_4] : memref<1x64xf32, #tpu.memory_space<vmem>>, vector<1x64xf32>
    %4 = vector.broadcast %3 : vector<1x64xf32> to vector<16x64xf32>
    %5 = arith.addf %2, %4 : vector<16x64xf32>
    %cst_5 = arith.constant 0.000000e+00 : f32
    %6 = vector.broadcast %cst_5 : f32 to vector<16x64xf32>
    %7 = arith.minimumf %5, %6 : vector<16x64xf32>
    %8 = math.exp %7 : vector<16x64xf32>
    %cst_6 = arith.constant 1.000000e+00 : f32
    %9 = vector.broadcast %cst_6 : f32 to vector<16x64xf32>
    %10 = arith.subf %8, %9 : vector<16x64xf32>
    %cst_7 = arith.constant 1.000000e+00 : f32
    %11 = vector.broadcast %cst_7 : f32 to vector<16x64xf32>
    %12 = arith.mulf %11, %10 : vector<16x64xf32>
    %cst_8 = arith.constant 0.000000e+00 : f32
    %13 = vector.broadcast %cst_8 : f32 to vector<16x64xf32>
    %14 = arith.cmpf ogt, %5, %13 : vector<16x64xf32>
    %15 = arith.select %14, %5, %12 : vector<16x64xi1>, vector<16x64xf32>
    %cst_9 = arith.constant dense<0.000000e+00> : vector<16xf32>
    %16 = vector.multi_reduction <add>, %15, %cst_9 [1] : vector<16x64xf32> to vector<16xf32>
    %17 = vector.shape_cast %16 : vector<16xf32> to vector<16x1xf32>
    %cst_10 = arith.constant 6.400000e+01 : f32
    %18 = vector.broadcast %cst_10 : f32 to vector<16x1xf32>
    %19 = arith.divf %17, %18 : vector<16x1xf32>
    %20 = arith.mulf %15, %15 : vector<16x64xf32>
    %cst_11 = arith.constant dense<0.000000e+00> : vector<16xf32>
    %21 = vector.multi_reduction <add>, %20, %cst_11 [1] : vector<16x64xf32> to vector<16xf32>
    %22 = vector.shape_cast %21 : vector<16xf32> to vector<16x1xf32>
    %cst_12 = arith.constant 6.400000e+01 : f32
    %23 = vector.broadcast %cst_12 : f32 to vector<16x1xf32>
    %24 = arith.divf %22, %23 : vector<16x1xf32>
    %25 = arith.mulf %19, %19 : vector<16x1xf32>
    %26 = arith.subf %24, %25 : vector<16x1xf32>
    %cst_13 = arith.constant 0.000000e+00 : f32
    %27 = vector.broadcast %cst_13 : f32 to vector<16x1xf32>
    %28 = arith.maximumf %26, %27 : vector<16x1xf32>
    %29 = vector.broadcast %19 : vector<16x1xf32> to vector<16x64xf32>
    %30 = arith.subf %15, %29 : vector<16x64xf32>
    %cst_14 = arith.constant 9.99999974E-6 : f32
    %31 = vector.broadcast %cst_14 : f32 to vector<16x1xf32>
    %32 = arith.addf %28, %31 : vector<16x1xf32>
    %33 = math.rsqrt %32 : vector<16x1xf32>
    %34 = vector.broadcast %33 : vector<16x1xf32> to vector<16x64xf32>
    %35 = arith.mulf %30, %34 : vector<16x64xf32>
    %c0_15 = arith.constant 0 : index
    %c0_16 = arith.constant 0 : index
    %36 = vector.load %arg4[%c0_15, %c0_16] : memref<1x64xf32, #tpu.memory_space<vmem>>, vector<1x64xf32>
    %37 = vector.broadcast %36 : vector<1x64xf32> to vector<16x64xf32>
    %38 = arith.mulf %35, %37 : vector<16x64xf32>
    %c0_17 = arith.constant 0 : index
    %c0_18 = arith.constant 0 : index
    %39 = vector.load %arg5[%c0_17, %c0_18] : memref<1x64xf32, #tpu.memory_space<vmem>>, vector<1x64xf32>
    %40 = vector.broadcast %39 : vector<1x64xf32> to vector<16x64xf32>
    %41 = arith.addf %38, %40 : vector<16x64xf32>
    %42 = arith.truncf %41 : vector<16x64xf32> to vector<16x64xbf16>
    %c0_19 = arith.constant 0 : index
    %c0_20 = arith.constant 0 : index
    %43 = vector.load %arg6[%c0_19, %c0_20] : memref<64x32xbf16, #tpu.memory_space<vmem>>, vector<64x32xbf16>
    %cst_21 = arith.constant dense<0.000000e+00> : vector<16x32xf32>
    %44 = tpu.matmul %42, %43, %cst_21 {dimension_numbers = #tpu.dot_dimension_numbers<[1], [0], [0], [1], [0, 0, 1, 1], [], []>} : vector<16x64xbf16>, vector<64x32xbf16>, vector<16x32xf32> -> vector<16x32xf32>
    %c0_22 = arith.constant 0 : index
    %c0_23 = arith.constant 0 : index
    %45 = vector.load %arg7[%c0_22, %c0_23] : memref<1x32xf32, #tpu.memory_space<vmem>>, vector<1x32xf32>
    %46 = vector.broadcast %45 : vector<1x32xf32> to vector<16x32xf32>
    %47 = arith.addf %44, %46 : vector<16x32xf32>
    %cst_24 = arith.constant 0.000000e+00 : f32
    %48 = vector.broadcast %cst_24 : f32 to vector<16x32xf32>
    %49 = arith.minimumf %47, %48 : vector<16x32xf32>
    %50 = math.exp %49 : vector<16x32xf32>
    %cst_25 = arith.constant 1.000000e+00 : f32
    %51 = vector.broadcast %cst_25 : f32 to vector<16x32xf32>
    %52 = arith.subf %50, %51 : vector<16x32xf32>
    %cst_26 = arith.constant 1.000000e+00 : f32
    %53 = vector.broadcast %cst_26 : f32 to vector<16x32xf32>
    %54 = arith.mulf %53, %52 : vector<16x32xf32>
    %cst_27 = arith.constant 0.000000e+00 : f32
    %55 = vector.broadcast %cst_27 : f32 to vector<16x32xf32>
    %56 = arith.cmpf ogt, %47, %55 : vector<16x32xf32>
    %57 = arith.select %56, %47, %54 : vector<16x32xi1>, vector<16x32xf32>
    %cst_28 = arith.constant dense<0.000000e+00> : vector<16xf32>
    %58 = vector.multi_reduction <add>, %57, %cst_28 [1] : vector<16x32xf32> to vector<16xf32>
    %59 = vector.shape_cast %58 : vector<16xf32> to vector<16x1xf32>
    %cst_29 = arith.constant 3.200000e+01 : f32
    %60 = vector.broadcast %cst_29 : f32 to vector<16x1xf32>
    %61 = arith.divf %59, %60 : vector<16x1xf32>
    %62 = arith.mulf %57, %57 : vector<16x32xf32>
    %cst_30 = arith.constant dense<0.000000e+00> : vector<16xf32>
    %63 = vector.multi_reduction <add>, %62, %cst_30 [1] : vector<16x32xf32> to vector<16xf32>
    %64 = vector.shape_cast %63 : vector<16xf32> to vector<16x1xf32>
    %cst_31 = arith.constant 3.200000e+01 : f32
    %65 = vector.broadcast %cst_31 : f32 to vector<16x1xf32>
    %66 = arith.divf %64, %65 : vector<16x1xf32>
    %67 = arith.mulf %61, %61 : vector<16x1xf32>
    %68 = arith.subf %66, %67 : vector<16x1xf32>
    %cst_32 = arith.constant 0.000000e+00 : f32
    %69 = vector.broadcast %cst_32 : f32 to vector<16x1xf32>
    %70 = arith.maximumf %68, %69 : vector<16x1xf32>
    %71 = vector.broadcast %61 : vector<16x1xf32> to vector<16x32xf32>
    %72 = arith.subf %57, %71 : vector<16x32xf32>
    %cst_33 = arith.constant 9.99999974E-6 : f32
    %73 = vector.broadcast %cst_33 : f32 to vector<16x1xf32>
    %74 = arith.addf %70, %73 : vector<16x1xf32>
    %75 = math.rsqrt %74 : vector<16x1xf32>
    %76 = vector.broadcast %75 : vector<16x1xf32> to vector<16x32xf32>
    %77 = arith.mulf %72, %76 : vector<16x32xf32>
    %c0_34 = arith.constant 0 : index
    %c0_35 = arith.constant 0 : index
    %78 = vector.load %arg8[%c0_34, %c0_35] : memref<1x32xf32, #tpu.memory_space<vmem>>, vector<1x32xf32>
    %79 = vector.broadcast %78 : vector<1x32xf32> to vector<16x32xf32>
    %80 = arith.mulf %77, %79 : vector<16x32xf32>
    %c0_36 = arith.constant 0 : index
    %c0_37 = arith.constant 0 : index
    %81 = vector.load %arg9[%c0_36, %c0_37] : memref<1x32xf32, #tpu.memory_space<vmem>>, vector<1x32xf32>
    %82 = vector.broadcast %81 : vector<1x32xf32> to vector<16x32xf32>
    %83 = arith.addf %80, %82 : vector<16x32xf32>
    %84 = arith.truncf %83 : vector<16x32xf32> to vector<16x32xbf16>
    %c0_38 = arith.constant 0 : index
    %c0_39 = arith.constant 0 : index
    %85 = vector.load %arg10[%c0_38, %c0_39] : memref<32x8xbf16, #tpu.memory_space<vmem>>, vector<32x8xbf16>
    %cst_40 = arith.constant dense<0.000000e+00> : vector<16x8xf32>
    %86 = tpu.matmul %84, %85, %cst_40 {dimension_numbers = #tpu.dot_dimension_numbers<[1], [0], [0], [1], [0, 0, 1, 1], [], []>} : vector<16x32xbf16>, vector<32x8xbf16>, vector<16x8xf32> -> vector<16x8xf32>
    %c0_41 = arith.constant 0 : index
    %c0_42 = arith.constant 0 : index
    %87 = vector.load %arg11[%c0_41, %c0_42] : memref<1x8xf32, #tpu.memory_space<vmem>>, vector<1x8xf32>
    %88 = vector.broadcast %87 : vector<1x8xf32> to vector<16x8xf32>
    %89 = arith.addf %86, %88 : vector<16x8xf32>
    %c0_43 = arith.constant 0 : index
    %c0_44 = arith.constant 0 : index
    %90 = vector.load %arg12[%c0_43, %c0_44] : memref<16x8xf32, #tpu.memory_space<vmem>>, vector<16x8xf32>
    tpu.vector_store %arg12[%c0_43, %c0_44], %89 {strides = array<i32>} : memref<16x8xf32, #tpu.memory_space<vmem>>, vector<16x8xf32>,
    return
  }
  func.func @transform_0(%arg0: i32) -> (i32, i32) {
    %c0_i32 = arith.constant 0 : i32
    %c0_i32_0 = arith.constant 0 : i32
    return %arg0, %c0_i32 : i32, i32
  }
  func.func @transform_1(%arg0: i32) -> (i32, i32) {
    %c0_i32 = arith.constant 0 : i32
    %c0_i32_0 = arith.constant 0 : i32
    %c0_i32_1 = arith.constant 0 : i32
    return %c0_i32, %c0_i32_0 : i32, i32
  }
  func.func @transform_2(%arg0: i32) -> (i32, i32) {
    %c0_i32 = arith.constant 0 : i32
    %c0_i32_0 = arith.constant 0 : i32
    %c0_i32_1 = arith.constant 0 : i32
    return %c0_i32, %c0_i32_0 : i32, i32
  }
  func.func @transform_3(%arg0: i32) -> (i32, i32) {
    %c0_i32 = arith.constant 0 : i32
    %c0_i32_0 = arith.constant 0 : i32
    %c0_i32_1 = arith.constant 0 : i32
    return %c0_i32, %c0_i32_0 : i32, i32
  }
  func.func @transform_4(%arg0: i32) -> (i32, i32) {
    %c0_i32 = arith.constant 0 : i32
    %c0_i32_0 = arith.constant 0 : i32
    %c0_i32_1 = arith.constant 0 : i32
    return %c0_i32, %c0_i32_0 : i32, i32
  }
  func.func @transform_5(%arg0: i32) -> (i32, i32) {
    %c0_i32 = arith.constant 0 : i32
    %c0_i32_0 = arith.constant 0 : i32
    %c0_i32_1 = arith.constant 0 : i32
    return %c0_i32, %c0_i32_0 : i32, i32
  }
  func.func @transform_6(%arg0: i32) -> (i32, i32) {
    %c0_i32 = arith.constant 0 : i32
    %c0_i32_0 = arith.constant 0 : i32
    %c0_i32_1 = arith.constant 0 : i32
    return %c0_i32, %c0_i32_0 : i32, i32
  }
  func.func @transform_7(%arg0: i32) -> (i32, i32) {
    %c0_i32 = arith.constant 0 : i32
    %c0_i32_0 = arith.constant 0 : i32
    %c0_i32_1 = arith.constant 0 : i32
    return %c0_i32, %c0_i32_0 : i32, i32
  }
  func.func @transform_8(%arg0: i32) -> (i32, i32) {
    %c0_i32 = arith.constant 0 : i32
    %c0_i32_0 = arith.constant 0 : i32
    %c0_i32_1 = arith.constant 0 : i32
    return %c0_i32, %c0_i32_0 : i32, i32
  }
  func.func @transform_9(%arg0: i32) -> (i32, i32) {
    %c0_i32 = arith.constant 0 : i32
    %c0_i32_0 = arith.constant 0 : i32
    %c0_i32_1 = arith.constant 0 : i32
    return %c0_i32, %c0_i32_0 : i32, i32
  }
  func.func @transform_10(%arg0: i32) -> (i32, i32) {
    %c0_i32 = arith.constant 0 : i32
    %c0_i32_0 = arith.constant 0 : i32
    %c0_i32_1 = arith.constant 0 : i32
    return %c0_i32, %c0_i32_0 : i32, i32
  }
  func.func @transform_11(%arg0: i32) -> (i32, i32) {
    %c0_i32 = arith.constant 0 : i32
    %c0_i32_0 = arith.constant 0 : i32
    return %arg0, %c0_i32 : i32, i32
  }
}

</mosaic_0001>

<llo_original>
// kernel: _forward_impl.1
$region0: #{_forward_impl.1}
  #allocation0 [shape = 'u32[]', space=smem, size = 0x4, offset = 0x4, fixed_abs, tag = 'smem constant byte address 0x4 - core index']
  #allocation1 [shape = 'u32[144,128]{1,0:T(1,128)}', space=vmem, size = 0x12000, scoped, tag = 'internal scratch']
  %s0 = inlined_call_operand.vmem [shape: bf16[8,32], index: 0, kind: input, shape index: {}]
  %s1 = inlined_call_operand.vmem [shape: bf16[32,64], index: 1, kind: input, shape index: {}]
  %s2 = inlined_call_operand.vmem [shape: f32[1,64], index: 2, kind: input, shape index: {}]
  %s3 = inlined_call_operand.vmem [shape: f32[1,64], index: 3, kind: input, shape index: {}]
  %s4 = inlined_call_operand.vmem [shape: f32[1,64], index: 4, kind: input, shape index: {}]
  %s5 = inlined_call_operand.vmem [shape: bf16[64,32], index: 5, kind: input, shape index: {}]
  %s6 = inlined_call_operand.vmem [shape: f32[1,32], index: 6, kind: input, shape index: {}]
  %s7 = inlined_call_operand.vmem [shape: f32[1,32], index: 7, kind: input, shape index: {}]
  %s8 = inlined_call_operand.vmem [shape: f32[1,32], index: 8, kind: input, shape index: {}]
  %s9 = inlined_call_operand.vmem [shape: bf16[32,8], index: 9, kind: input, shape index: {}]
  %s10 = inlined_call_operand.vmem [shape: f32[1,8], index: 10, kind: input, shape index: {}]
  %s11 = inlined_call_operand.hbm [shape: f32[8,8], index: 11, kind: output, shape index: {}]
  %s12 = sld [smem:[#allocation0]]
  $region54: #{_forward_impl.1} parent=0
    _
  %s14 = ssub.s32 1, %s12
  %s15 = scalar_select 0, %s14, %s12
  $region1: #{_forward_impl.1} parent=0
    #allocation2 [shape = 'u8[8192]{0}', space=vmem, size = 0x2000, scoped, tag = 'output window, operand 0, single buffered']
    #allocation3 [shape = 's32[1]{0}', space=sflag, size = 0x4, scoped, tag = 'scoped memory for _forward_impl.1']
    %16 = vsyncpa [#allocation3], 0
    // Predicated region
    $region2: #{_forward_impl.1} parent=1 // pred_check
      _
    $region3: #{_forward_impl.1} parent=1 // pred_check_branch
      %18 = sbr.rel (0) target = $region5
    $region4: #{_forward_impl.1} parent=1 // pred_region
      _
    $region5: #{_forward_impl.1} parent=1 // pred_fallthru
      _
    // Predicated region
    $region6: #{_forward_impl.1} parent=1 // pred_check
      _
    $region7: #{_forward_impl.1} parent=1 // pred_check_branch
      %20 = sbr.rel (0) target = $region9
    $region8: #{_forward_impl.1} parent=1 // pred_region
      _
    $region9: #{_forward_impl.1} parent=1 // pred_fallthru
      _
    // Predicated region
    $region10: #{_forward_impl.1} parent=1 // pred_check
      _
    $region11: #{_forward_impl.1} parent=1 // pred_check_branch
      %22 = sbr.rel (0) target = $region13
    $region12: #{_forward_impl.1} parent=1 // pred_region
      _
    $region13: #{_forward_impl.1} parent=1 // pred_fallthru
      _
    // Predicated region
    $region14: #{_forward_impl.1} parent=1 // pred_check
      _
    $region15: #{_forward_impl.1} parent=1 // pred_check_branch
      %24 = sbr.rel (0) target = $region17
    $region16: #{_forward_impl.1} parent=1 // pred_region
      _
    $region17: #{_forward_impl.1} parent=1 // pred_fallthru
      _
    // Predicated region
    $region18: #{_forward_impl.1} parent=1 // pred_check
      _
    $region19: #{_forward_impl.1} parent=1 // pred_check_branch
      %26 = sbr.rel (0) target = $region21
    $region20: #{_forward_impl.1} parent=1 // pred_region
      _
    $region21: #{_forward_impl.1} parent=1 // pred_fallthru
      _
    // Predicated region
    $region22: #{_forward_impl.1} parent=1 // pred_check
      _
    $region23: #{_forward_impl.1} parent=1 // pred_check_branch
      %28 = sbr.rel (0) target = $region25
    $region24: #{_forward_impl.1} parent=1 // pred_region
      _
    $region25: #{_forward_impl.1} parent=1 // pred_fallthru
      _
    // Predicated region
    $region26: #{_forward_impl.1} parent=1 // pred_check
      _
    $region27: #{_forward_impl.1} parent=1 // pred_check_branch
      %30 = sbr.rel (0) target = $region29
    $region28: #{_forward_impl.1} parent=1 // pred_region
      _
    $region29: #{_forward_impl.1} parent=1 // pred_fallthru
      _
    // Predicated region
    $region30: #{_forward_impl.1} parent=1 // pred_check
      _
    $region31: #{_forward_impl.1} parent=1 // pred_check_branch
      %32 = sbr.rel (0) target = $region33
    $region32: #{_forward_impl.1} parent=1 // pred_region
      _
    $region33: #{_forward_impl.1} parent=1 // pred_fallthru
      _
    // Predicated region
    $region34: #{_forward_impl.1} parent=1 // pred_check
      _
    $region35: #{_forward_impl.1} parent=1 // pred_check_branch
      %34 = sbr.rel (0) target = $region37
    $region36: #{_forward_impl.1} parent=1 // pred_region
      _
    $region37: #{_forward_impl.1} parent=1 // pred_fallthru
      _
    // Predicated region
    $region38: #{_forward_impl.1} parent=1 // pred_check
      _
    $region39: #{_forward_impl.1} parent=1 // pred_check_branch
      %36 = sbr.rel (0) target = $region41
    $region40: #{_forward_impl.1} parent=1 // pred_region
      _
    $region41: #{_forward_impl.1} parent=1 // pred_fallthru
      _
    // Predicated region
    $region42: #{_forward_impl.1} parent=1 // pred_check
      _
    $region43: #{_forward_impl.1} parent=1 // pred_check_branch
      %38 = sbr.rel (0) target = $region45
    $region44: #{_forward_impl.1} parent=1 // pred_region
      _
    $region45: #{_forward_impl.1} parent=1 // pred_fallthru
      _
    %v40 = vld [vmem:[%s0] sm:$0xf]
    %v41 = vld [vmem:[%s0 + $0x4] sm:$0xf]
    %v42 = vld [vmem:[%s1] sm:$0xf]
    %v43 = vld [vmem:[%s1 + $0x4] sm:$0xf]
    %v44 = vld [vmem:[%s1 + $0x8] sm:$0xf]
    %v45 = vld [vmem:[%s1 + $0xc] sm:$0xf]
    %v46 = vld [vmem:[%s2] sm:$0x1]
    %v48 = vlaneseq
    %v49 = vshrl.u32 %v48, 7
    %v50 = vsub.s32 0, %v49
    %v51 = vrot.slane %v46, %v50
    %v55 = vunpack.c.l.b16 %v40
    %v56 = vunpack.c.l.b16 %v41
    %v57 = vpack.c.b16 %v56, %v55
    %v62 = vunpack.c.l.b16 %v42
    %v63 = vunpack.c.l.b16 %v43
    %v64 = vunpack.c.l.b16 %v44
    %v65 = vunpack.c.l.b16 %v45
    %v66 = vpack.c.b16 %v63, %v62
    %v67 = vpack.c.b16 %v65, %v64
    %vm70 = vcmask 261120
    %v72 = vsel %vm70, %v57, 0
    %74 = vmatprep.subr.bf16.mxu0 0
    %75 = vmatpush1.bf16.msra.mxu0 %v66
    %76 = vmatprep.subr.bf16.mxu0 0
    %77 = vmatpush1.bf16.msra.mxu0 %v67
    %78 = vmatprep.subr.bf16.mxu0 0
    %79 = vmatpush1.bf16.msra.mxu0 0
    %80 = vmatprep.subr.bf16.mxu0 0
    %81 = vmatpush1.bf16.msra.mxu0 0
    %82 = vmatprep.subr.bf16.mxu0 0
    %83 = vmatpush1.bf16.msra.mxu0 0
    %84 = vmatprep.subr.bf16.mxu0 0
    %85 = vmatpush1.bf16.msra.mxu0 0
    %86 = vmatprep.subr.bf16.mxu0 0
    %87 = vmatpush1.bf16.msra.mxu0 0
    %88 = vmatprep.subr.bf16.mxu0 0
    %89 = vmatpush1.bf16.msra.mxu0 0
    %90 = vmatprep.subr.bf16.mxu0 0
    %91 = vmatpush1.bf16.msra.mxu0 0
    %92 = vmatprep.subr.bf16.mxu0 0
    %93 = vmatpush1.bf16.msra.mxu0 0
    %94 = vmatprep.subr.bf16.mxu0 0
    %95 = vmatpush1.bf16.msra.mxu0 0
    %96 = vmatprep.subr.bf16.mxu0 0
    %97 = vmatpush1.bf16.msra.mxu0 0
    %98 = vmatprep.subr.bf16.mxu0 0
    %99 = vmatpush1.bf16.msra.mxu0 0
    %100 = vmatprep.subr.bf16.mxu0 0
    %101 = vmatpush1.bf16.msra.mxu0 0
    %102 = vmatprep.subr.bf16.mxu0 0
    %103 = vmatpush1.bf16.msra.mxu0 0
    %104 = vmatprep.subr.bf16.mxu0 0
    %105 = vmatpush1.bf16.msra.mxu0 0
    %106 = vmatprep.mubr.bf16.mxu0 0
    %107 = vmatmul.mubr.bf16.gmra.mrb[0].mxu0 %v72
    %v108 = vpop.f32.mrb[0].mxu0
    %v109 = vadd.f32 %v51, %v108
    %v110 = vpop.f32.mrb[0].mxu0
    %v111 = vpop.f32.mrb[0].mxu0
    %v112 = vadd.f32 %v51, %v111
    %v113 = vpop.f32.mrb[0].mxu0
    %114 = vdwg.mxu0
    %v115 = vmin.f32 %v109, 0.0
    %v116 = vmin.f32 %v112, 0.0
    %v117 = vmul.f32 %v115, 1.442695
    %v118 = vpow.pop %v117
    %v119 = vmul.f32 %v116, 1.442695
    %v120 = vpow.pop %v119
    %v121 = vsub.f32 %v118, 1.0
    %v122 = vsub.f32 %v120, 1.0
    %vm123 = vcmp.gt.f32.partialorder %v109, 0.0
    %vm124 = vcmp.gt.f32.partialorder %v112, 0.0
    %v125 = vsel %vm123, %v109, %v121
    %v126 = vsel %vm124, %v112, %v122
    %vm127 = vcmask 523264
    %v128 = vsel %vm127, %v125, 0.0
    %129 = vadd.xlane.f32.xlu0 %v128
    %v130 = vpop.xlane.xlu0 %129
    %v131 = vsel %vm127, %v126, 0.0
    %132 = vadd.xlane.f32.xlu0 %v131
    %v133 = vpop.xlane.xlu0 %132
    %v134 = vrcp.pop 64.0
    %v135 = vmul.f32 %v130, %v134
    %v136 = vmul.f32 %v133, %v134
    %v137 = vmul.f32 %v125, %v125
    %v138 = vmul.f32 %v126, %v126
    %v139 = vsel %vm127, %v137, 0.0
    %140 = vadd.xlane.f32.xlu0 %v139
    %v141 = vpop.xlane.xlu0 %140
    %v142 = vsel %vm127, %v138, 0.0
    %143 = vadd.xlane.f32.xlu0 %v142
    %v144 = vpop.xlane.xlu0 %143
    %v145 = vmul.f32 %v141, %v134
    %v146 = vmul.f32 %v144, %v134
    %v147 = vmul.f32 %v135, %v135
    %v148 = vmul.f32 %v136, %v136
    %v149 = vsub.f32 %v145, %v147
    %v150 = vsub.f32 %v146, %v148
    %v151 = vmax.f32 %v149, 0.0
    %v152 = vmax.f32 %v150, 0.0
    %v153 = vsub.f32 %v125, %v135
    %v154 = vsub.f32 %v126, %v136
    %v155 = vadd.f32 %v151, 1e-05
    %v156 = vadd.f32 %v152, 1e-05
    %v157 = vrsqrt.pop %v155
    %v158 = vrsqrt.pop %v156
    %v159 = vmul.f32 %v153, %v157
    %v160 = vmul.f32 %v154, %v158
    %v161 = vld [vmem:[%s3] sm:$0x1]
    %v163 = vlaneseq
    %v164 = vshrl.u32 %v163, 7
    %v165 = vsub.s32 0, %v164
    %v166 = vrot.slane %v161, %v165
    %v168 = vmul.f32 %v159, %v166
    %v169 = vmul.f32 %v160, %v166
    %v170 = vld [vmem:[%s4] sm:$0x1]
    %v172 = vlaneseq
    %v173 = vshrl.u32 %v172, 7
    %v174 = vsub.s32 0, %v173
    %v175 = vrot.slane %v170, %v174
    %v177 = vadd.f32 %v168, %v175
    %v178 = vadd.f32 %v169, %v175
    %v179 = vpack.c.bf16 %v178, %v177
    %v180 = vld [vmem:[%s5] sm:$0xf]
    %v181 = vld [vmem:[%s5 + $0x4] sm:$0xf]
    %v182 = vld [vmem:[%s5 + $0x8] sm:$0xf]
    %v183 = vld [vmem:[%s5 + $0xc] sm:$0xf]
    %v184 = vld [vmem:[%s5 + $0x10] sm:$0xf]
    %v185 = vld [vmem:[%s5 + $0x14] sm:$0xf]
    %v186 = vld [vmem:[%s5 + $0x18] sm:$0xf]
    %v187 = vld [vmem:[%s5 + $0x1c] sm:$0xf]
    %v188 = vld [vmem:[%s6] sm:$0x1]
    %v190 = vlaneseq
    %v191 = vshrl.u32 %v190, 7
    %v192 = vsub.s32 0, %v191
    %v193 = vrot.slane %v188, %v192
    %v203 = vunpack.c.l.b16 %v180
    %v204 = vunpack.c.l.b16 %v181
    %v205 = vunpack.c.l.b16 %v182
    %v206 = vunpack.c.l.b16 %v183
    %v207 = vunpack.c.l.b16 %v184
    %v208 = vunpack.c.l.b16 %v185
    %v209 = vunpack.c.l.b16 %v186
    %v210 = vunpack.c.l.b16 %v187
    %v211 = vpack.c.b16 %v204, %v203
    %v212 = vpack.c.b16 %v206, %v205
    %v213 = vpack.c.b16 %v208, %v207
    %v214 = vpack.c.b16 %v210, %v209
    %v220 = vsel %vm127, %v179, 0
    %222 = vmatprep.subr.bf16.mxu0 0
    %223 = vmatpush1.bf16.msra.mxu0 %v211
    %224 = vmatprep.subr.bf16.mxu0 0
    %225 = vmatpush1.bf16.msra.mxu0 %v212
    %226 = vmatprep.subr.bf16.mxu0 0
    %227 = vmatpush1.bf16.msra.mxu0 %v213
    %228 = vmatprep.subr.bf16.mxu0 0
    %229 = vmatpush1.bf16.msra.mxu0 %v214
    %230 = vmatprep.subr.bf16.mxu0 0
    %231 = vmatpush1.bf16.msra.mxu0 0
    %232 = vmatprep.subr.bf16.mxu0 0
    %233 = vmatpush1.bf16.msra.mxu0 0
    %234 = vmatprep.subr.bf16.mxu0 0
    %235 = vmatpush1.bf16.msra.mxu0 0
    %236 = vmatprep.subr.bf16.mxu0 0
    %237 = vmatpush1.bf16.msra.mxu0 0
    %238 = vmatprep.subr.bf16.mxu0 0
    %239 = vmatpush1.bf16.msra.mxu0 0
    %240 = vmatprep.subr.bf16.mxu0 0
    %241 = vmatpush1.bf16.msra.mxu0 0
    %242 = vmatprep.subr.bf16.mxu0 0
    %243 = vmatpush1.bf16.msra.mxu0 0
    %244 = vmatprep.subr.bf16.mxu0 0
    %245 = vmatpush1.bf16.msra.mxu0 0
    %246 = vmatprep.subr.bf16.mxu0 0
    %247 = vmatpush1.bf16.msra.mxu0 0
    %248 = vmatprep.subr.bf16.mxu0 0
    %249 = vmatpush1.bf16.msra.mxu0 0
    %250 = vmatprep.subr.bf16.mxu0 0
    %251 = vmatpush1.bf16.msra.mxu0 0
    %252 = vmatprep.subr.bf16.mxu0 0
    %253 = vmatpush1.bf16.msra.mxu0 0
    %254 = vmatprep.mubr.bf16.mxu0 0
    %255 = vmatmul.mubr.bf16.gmra.mrb[0].mxu0 %v220
    %v256 = vpop.f32.mrb[0].mxu0
    %v257 = vadd.f32 %v193, %v256
    %v258 = vpop.f32.mrb[0].mxu0
    %v259 = vpop.f32.mrb[0].mxu0
    %v260 = vadd.f32 %v193, %v259
    %v261 = vpop.f32.mrb[0].mxu0
    %262 = vdwg.mxu0
    %v263 = vmin.f32 %v257, 0.0
    %v264 = vmin.f32 %v260, 0.0
    %v265 = vmul.f32 %v263, 1.442695
    %v266 = vpow.pop %v265
    %v267 = vmul.f32 %v264, 1.442695
    %v268 = vpow.pop %v267
    %v269 = vsub.f32 %v266, 1.0
    %v270 = vsub.f32 %v268, 1.0
    %vm271 = vcmp.gt.f32.partialorder %v257, 0.0
    %vm272 = vcmp.gt.f32.partialorder %v260, 0.0
    %v273 = vsel %vm271, %v257, %v269
    %v274 = vsel %vm272, %v260, %v270
    %v275 = vsel %vm70, %v273, 0.0
    %276 = vadd.xlane.f32.xlu0 %v275
    %v277 = vpop.xlane.xlu0 %276
    %v278 = vsel %vm70, %v274, 0.0
    %279 = vadd.xlane.f32.xlu0 %v278
    %v280 = vpop.xlane.xlu0 %279
    %v281 = vrcp.pop 32.0
    %v282 = vmul.f32 %v277, %v281
    %v283 = vmul.f32 %v280, %v281
    %v284 = vmul.f32 %v273, %v273
    %v285 = vmul.f32 %v274, %v274
    %v286 = vsel %vm70, %v284, 0.0
    %287 = vadd.xlane.f32.xlu0 %v286
    %v288 = vpop.xlane.xlu0 %287
    %v289 = vsel %vm70, %v285, 0.0
    %290 = vadd.xlane.f32.xlu0 %v289
    %v291 = vpop.xlane.xlu0 %290
    %v292 = vmul.f32 %v288, %v281
    %v293 = vmul.f32 %v291, %v281
    %v294 = vmul.f32 %v282, %v282
    %v295 = vmul.f32 %v283, %v283
    %v296 = vsub.f32 %v292, %v294
    %v297 = vsub.f32 %v293, %v295
    %v298 = vmax.f32 %v296, 0.0
    %v299 = vmax.f32 %v297, 0.0
    %v300 = vsub.f32 %v273, %v282
    %v301 = vsub.f32 %v274, %v283
    %v302 = vadd.f32 %v298, 1e-05
    %v303 = vadd.f32 %v299, 1e-05
    %v304 = vrsqrt.pop %v302
    %v305 = vrsqrt.pop %v303
    %v306 = vmul.f32 %v300, %v304
    %v307 = vmul.f32 %v301, %v305
    %v308 = vld [vmem:[%s7] sm:$0x1]
    %v310 = vlaneseq
    %v311 = vshrl.u32 %v310, 7
    %v312 = vsub.s32 0, %v311
    %v313 = vrot.slane %v308, %v312
    %v315 = vmul.f32 %v306, %v313
    %v316 = vmul.f32 %v307, %v313
    %v317 = vld [vmem:[%s8] sm:$0x1]
    %v319 = vlaneseq
    %v320 = vshrl.u32 %v319, 7
    %v321 = vsub.s32 0, %v320
    %v322 = vrot.slane %v317, %v321
    %v324 = vadd.f32 %v315, %v322
    %v325 = vadd.f32 %v316, %v322
    %v326 = vpack.c.bf16 %v325, %v324
    %v327 = vld [vmem:[%s9] sm:$0xf]
    %v328 = vld [vmem:[%s9 + $0x4] sm:$0xf]
    %v329 = vld [vmem:[%s9 + $0x8] sm:$0xf]
    %v330 = vld [vmem:[%s9 + $0xc] sm:$0xf]
    %v331 = vld [vmem:[%s10] sm:$0x1]
    %v333 = vlaneseq
    %v334 = vshrl.u32 %v333, 7
    %v335 = vsub.s32 0, %v334
    %v336 = vrot.slane %v331, %v335
    %v342 = vunpack.c.l.b16 %v327
    %v343 = vunpack.c.l.b16 %v328
    %v344 = vunpack.c.l.b16 %v329
    %v345 = vunpack.c.l.b16 %v330
    %v346 = vpack.c.b16 %v343, %v342
    %v347 = vpack.c.b16 %v345, %v344
    %v351 = vsel %vm70, %v326, 0
    %353 = vmatprep.subr.bf16.mxu0 0
    %354 = vmatpush1.bf16.msra.mxu0 %v346
    %355 = vmatprep.subr.bf16.mxu0 0
    %356 = vmatpush1.bf16.msra.mxu0 %v347
    %357 = vmatprep.subr.bf16.mxu0 0
    %358 = vmatpush1.bf16.msra.mxu0 0
    %359 = vmatprep.subr.bf16.mxu0 0
    %360 = vmatpush1.bf16.msra.mxu0 0
    %361 = vmatprep.subr.bf16.mxu0 0
    %362 = vmatpush1.bf16.msra.mxu0 0
    %363 = vmatprep.subr.bf16.mxu0 0
    %364 = vmatpush1.bf16.msra.mxu0 0
    %365 = vmatprep.subr.bf16.mxu0 0
    %366 = vmatpush1.bf16.msra.mxu0 0
    %367 = vmatprep.subr.bf16.mxu0 0
    %368 = vmatpush1.bf16.msra.mxu0 0
    %369 = vmatprep.subr.bf16.mxu0 0
    %370 = vmatpush1.bf16.msra.mxu0 0
    %371 = vmatprep.subr.bf16.mxu0 0
    %372 = vmatpush1.bf16.msra.mxu0 0
    %373 = vmatprep.subr.bf16.mxu0 0
    %374 = vmatpush1.bf16.msra.mxu0 0
    %375 = vmatprep.subr.bf16.mxu0 0
    %376 = vmatpush1.bf16.msra.mxu0 0
    %377 = vmatprep.subr.bf16.mxu0 0
    %378 = vmatpush1.bf16.msra.mxu0 0
    %379 = vmatprep.subr.bf16.mxu0 0
    %380 = vmatpush1.bf16.msra.mxu0 0
    %381 = vmatprep.subr.bf16.mxu0 0
    %382 = vmatpush1.bf16.msra.mxu0 0
    %383 = vmatprep.subr.bf16.mxu0 0
    %384 = vmatpush1.bf16.msra.mxu0 0
    %385 = vmatprep.mubr.bf16.mxu0 0
    %386 = vmatmul.mubr.bf16.gmra.mrb[0].mxu0 %v351
    %v387 = vpop.f32.mrb[0].mxu0
    %v388 = vadd.f32 %v336, %v387
    %v389 = vpop.f32.mrb[0].mxu0
    %v390 = vpop.f32.mrb[0].mxu0
    %v391 = vadd.f32 %v336, %v390
    %v392 = vpop.f32.mrb[0].mxu0
    %393 = vdwg.mxu0
    %vm394 = vcmask 64512
    %395 = vst.msk [vmem:[#allocation2] sm:$0xff] %vm394, %v388
    %396 = vst.msk [vmem:[#allocation2 + $0x8] sm:$0xff] %vm394, %v391
    // Predicated region
    $region46: #{_forward_impl.1} parent=1 // pred_check
      _
    $region47: #{_forward_impl.1} parent=1 // pred_check_branch
      %398 = sbr.rel (0) target = $region49
    $region48: #{_forward_impl.1} parent=1 // pred_region
      %s400 = ssub.s32 256, 128
      %401 = vsyncadd [#allocation3], %s400
      %s402 = sshll.u32 [#allocation2], 4
      %s403 = int_to_ptr.vmem [resolvable:$true] %s402
      %408 = dma.vmem_to_hbm [thread:$0]  %s403, 128, %s11, [#allocation3], 128, 128, 8
    $region49: #{_forward_impl.1} parent=1 // pred_fallthru
      _
    // Predicated region
    $region50: #{_forward_impl.1} parent=1 // pred_check
      _
    $region51: #{_forward_impl.1} parent=1 // pred_check_branch
      %410 = sbr.rel (0) target = $region53
    $region52: #{_forward_impl.1} parent=1 // pred_region
      %411 = dma.done [#allocation3], 256
    $region53: #{_forward_impl.1} parent=1 // pred_fallthru
      _
    %412 = vsyncpa [#allocation3], 1

</llo_original>
